<compile_context>
chip_gen: v5e
topology: v5e:2x2
jax: 0.10.0
libtpu: 0.0.40
codegen_flags: <defaults>
</compile_context>

<pallas_src>
import jax
import jax.numpy as jnp
from jax import lax
from jax.experimental import pallas as pl
from jax.experimental.pallas import tpu as pltpu

EPS = 1e-9
_VMEM_LIMIT = 32 * 1024 * 1024  # raise v5e's 16 MiB scoped default; <= v6e/v7x defaults


def _choose_tile_n(n: int, target: int = 512) -> int:
    """Largest multiple of 128 <= target that divides n (else the full n)."""
    if n <= target or n % 128 != 0:
        return n
    best = 128
    t = 256
    while t <= target:
        if n % t == 0:
            best = t
        t += 128
    return best


# ----------------------------------------------------------------------------
# Kernel 1: pairwise GT x anchor geometry (IoU + squared center distance).
#   GT coords arrive pre-split as [M, 1] columns, anchor coords as [1, N] rows
#   (avoids per-tile lane-slice relayouts of a 4-wide array).
# ----------------------------------------------------------------------------
def _geometry_kernel(gx1_ref, gy1_ref, gx2_ref, gy2_ref,
                     ax1_ref, ay1_ref, ax2_ref, ay2_ref,
                     ov_ref, d2_ref):
    gx1 = gx1_ref[...]; gy1 = gy1_ref[...]
    gx2 = gx2_ref[...]; gy2 = gy2_ref[...]          # [M, 1]
    ax1 = ax1_ref[...]; ay1 = ay1_ref[...]
    ax2 = ax2_ref[...]; ay2 = ay2_ref[...]          # [1, T]

    area_g = (gx2 - gx1) * (gy2 - gy1)              # [M, 1]
    area_a = (ax2 - ax1) * (ay2 - ay1)              # [1, T]
    iw = jnp.maximum(jnp.minimum(gx2, ax2) - jnp.maximum(gx1, ax1), 0.0)
    ih = jnp.maximum(jnp.minimum(gy2, ay2) - jnp.maximum(gy1, ay1), 0.0)
    inter = iw * ih                                  # [M, T]
    ov_ref[...] = inter / (area_g + area_a - inter + EPS)

    # squared center distance (sqrt dropped: only used for top-k ranking)
    dx = (gx1 + gx2) * 0.5 - (ax1 + ax2) * 0.5
    dy = (gy1 + gy2) * 0.5 - (ay1 + ay2) * 0.5
    d2_ref[...] = dx * dx + dy * dy


def pairwise_geometry(gt_flat, anchors, tile_n):
    M = gt_flat.shape[0]
    N = anchors.shape[0]
    n_tiles = N // tile_n

    gcols = [gt_flat[:, i:i + 1] for i in range(4)]            # 4 x [M, 1]
    acols = [anchors[:, i].reshape(1, N) for i in range(4)]    # 4 x [1, N]

    col_spec = pl.BlockSpec((M, 1), lambda j: (0, 0))
    row_spec = pl.BlockSpec((1, tile_n), lambda j: (0, j))
    out_spec = pl.BlockSpec((M, tile_n), lambda j: (0, j))

    return pl.pallas_call(
        _geometry_kernel,
        out_shape=(jax.ShapeDtypeStruct((M, N), jnp.float32),
                   jax.ShapeDtypeStruct((M, N), jnp.float32)),
        grid=(n_tiles,),
        in_specs=[col_spec] * 4 + [row_spec] * 4,
        out_specs=(out_spec, out_spec),
        compiler_params=pltpu.CompilerParams(
            dimension_semantics=("parallel",),
            vmem_limit_bytes=_VMEM_LIMIT),
    )(*gcols, *acols)


# ----------------------------------------------------------------------------
# Kernel 2: fused positive-sample mask, collision fix, per-anchor reductions
#           and gt-vs-pred IoU (formerly a separate batch_iou pallas_call).
#   Grid: (bs, N // TILE_N), both axes parallel.  All reductions are along the
#   GT (sublane) axis, so tiling the anchor (lane) axis is safe.
# ----------------------------------------------------------------------------
def _assign_kernel(ov_ref, topk_ref, thr_ref, mgt_ref,
                   gx1_ref, gy1_ref, gx2_ref, gy2_ref,
                   px1_ref, py1_ref, px2_ref, py2_ref,
                   acx_ref, acy_ref,
                   agi_ref, mps_ref, iou_ref):
    ov = ov_ref[0]                                   # [M, T] f32
    topk = topk_ref[0].astype(jnp.float32)           # [M, T]  (bf16 0/1 -> f32)
    thr = thr_ref[0]                                 # [M, 1]
    mg = mgt_ref[0]                                  # [M, 1]
    gx1 = gx1_ref[0]; gy1 = gy1_ref[0]
    gx2 = gx2_ref[0]; gy2 = gy2_ref[0]               # [M, 1]
    px1 = px1_ref[0]; py1 = py1_ref[0]
    px2 = px2_ref[0]; py2 = py2_ref[0]               # [1, T]
    acx = acx_ref[...]; acy = acy_ref[...]           # [1, T]
    M = ov.shape[0]

    # candidates_in_gt, recomputed in-kernel (saves an [bs, M, N] HBM pass)
    mind = jnp.minimum(jnp.minimum(acx - gx1, acy - gy1),
                       jnp.minimum(gx2 - acx, gy2 - acy))
    in_gts = (mind > EPS).astype(jnp.float32)

    # is_pos = is_in_topk * (overlaps > threshold)   (== torch where-form)
    is_pos = topk * (ov > thr).astype(jnp.float32)

    mask_pos = is_pos * in_gts * mg
    mps0 = jnp.sum(mask_pos, axis=0, keepdims=True)                  # [1, T]

    # collision fix: anchors matched to >1 GT keep only the max-IoU GT
    iota_m = lax.broadcasted_iota(jnp.int32, ov.shape, 0)
    ov_max = jnp.max(ov, axis=0, keepdims=True)
    ov_argmax = jnp.min(jnp.where(ov == ov_max, iota_m, M),
                        axis=0, keepdims=True)                       # first max
    is_max_ov = (iota_m == ov_argmax).astype(jnp.float32)
    mask_pos = jnp.where(mps0 > 1.0, is_max_ov, mask_pos)

    mps = jnp.sum(mask_pos, axis=0, keepdims=True)
    mp_max = jnp.max(mask_pos, axis=0, keepdims=True)
    agi = jnp.min(jnp.where(mask_pos == mp_max, iota_m, M),
                  axis=0, keepdims=True)                             # first max

    # fused batch_iou(gt, pred) * mask_pos, reduced over the GT axis
    area_g = (gx2 - gx1) * (gy2 - gy1)
    area_p = (px2 - px1) * (py2 - py1)
    iw = jnp.maximum(jnp.minimum(gx2, px2) - jnp.maximum(gx1, px1), 0.0)
    ih = jnp.maximum(jnp.minimum(gy2, py2) - jnp.maximum(gy1, py1), 0.0)
    inter = iw * ih
    gp = inter / (area_g + area_p - inter + EPS)

    agi_ref[0] = agi
    mps_ref[0] = mps
    iou_ref[0] = jnp.max(gp * mask_pos, axis=0, keepdims=True)


def fused_assign(overlaps, is_in_topk, thr, mask_gt, gt_bboxes, pred_bboxes,
                 anchor_bboxes, tile_n):
    bs, M, N = overlaps.shape
    n_tiles = N // tile_n

    gcols = [gt_bboxes[..., i:i + 1] for i in range(4)]              # [bs, M, 1]
    pcols = [pred_bboxes[:, :, i][:, None, :] for i in range(4)]     # [bs, 1, N]
    acx = ((anchor_bboxes[:, 0] + anchor_bboxes[:, 2]) * 0.5).reshape(1, N)
    acy = ((anchor_bboxes[:, 1] + anchor_bboxes[:, 3]) * 0.5).reshape(1, N)

    mat_spec = pl.BlockSpec((1, M, tile_n), lambda b, j: (b, 0, j))
    col_spec = pl.BlockSpec((1, M, 1), lambda b, j: (b, 0, 0))
    row_spec = pl.BlockSpec((1, 1, tile_n), lambda b, j: (b, 0, j))
    anc_spec = pl.BlockSpec((1, tile_n), lambda b, j: (0, j))
    out_spec = pl.BlockSpec((1, 1, tile_n), lambda b, j: (b, 0, j))

    agi, mps, ioum = pl.pallas_call(
        _assign_kernel,
        out_shape=(jax.ShapeDtypeStruct((bs, 1, N), jnp.int32),
                   jax.ShapeDtypeStruct((bs, 1, N), jnp.float32),
                   jax.ShapeDtypeStruct((bs, 1, N), jnp.float32)),
        grid=(bs, n_tiles),
        in_specs=[mat_spec, mat_spec, col_spec, col_spec]
                 + [col_spec] * 4 + [row_spec] * 4 + [anc_spec] * 2,
        out_specs=(out_spec, out_spec, out_spec),
        compiler_params=pltpu.CompilerParams(
            dimension_semantics=("parallel", "parallel"),
            vmem_limit_bytes=_VMEM_LIMIT),
    )(overlaps, is_in_topk.astype(jnp.bfloat16), thr,
      mask_gt.astype(jnp.float32), *gcols, *pcols, acx, acy)
    return agi[:, 0, :], mps[:, 0, :], ioum[:, 0, :]


# ----------------------------------------------------------------------------
# ATSS assigner (glue around the two kernels)
# ----------------------------------------------------------------------------
class ATSSAssignerPallas:
    def __init__(self, n_classes: int, topk: int = 9):
        self.n_classes = n_classes
        self.topk = topk

    def __call__(self, anchor_bboxes, n_level_bboxes, gt_labels, gt_bboxes,
                 mask_gt, pred_bboxes):
        n_anchors = anchor_bboxes.shape[0]
        bs, n_max_boxes = gt_bboxes.shape[:2]

        if n_max_boxes == 0:
            return (jnp.full((bs, n_anchors), self.n_classes, jnp.int32),
                    jnp.zeros((bs, n_anchors, 4), jnp.float32),
                    jnp.zeros((bs, n_anchors, self.n_classes), jnp.float32),
                    jnp.zeros((bs, n_anchors), bool),
                    jnp.zeros((bs, n_anchors), jnp.int32))

        tile_n = _choose_tile_n(n_anchors)

        gt_flat = gt_bboxes.reshape(-1, 4)
        overlaps_f, dist2_f = pairwise_geometry(gt_flat, anchor_bboxes, tile_n)
        overlaps = overlaps_f.reshape(bs, n_max_boxes, n_anchors)
        dist2 = dist2_f.reshape(bs, n_max_boxes, n_anchors)

        is_in_topk, topk_idxs = self._select_topk_candidates(
            dist2, n_level_bboxes, mask_gt)
        thr = self._overlaps_threshold(is_in_topk, topk_idxs, overlaps)

        assigned_gt_idx, mask_pos_sum, iou_max = fused_assign(
            overlaps, is_in_topk, thr, mask_gt, gt_bboxes, pred_bboxes,
            anchor_bboxes, tile_n)

        assigned_labels, assigned_bboxes, assigned_scores = \
            self._get_final_assignments(gt_labels, gt_bboxes, assigned_gt_idx,
                                        mask_pos_sum)
        assigned_scores = assigned_scores * iou_max[..., None]
        return (assigned_labels, assigned_bboxes, assigned_scores,
                mask_pos_sum > 0, assigned_gt_idx)

    # TODO(synk): per-level top-k (sorting) has no clean Pallas equivalent; done
    # with jax.lax.top_k in plain JAX (on squared distances — same ranking).
    def _select_topk_candidates(self, distances, n_level_bboxes, mask_gt):
        mask = jnp.tile(mask_gt.astype(bool), (1, 1, self.topk))   # [bs, M, topk]
        is_in_topk_list, topk_idx_list = [], []
        start = 0
        for nb in n_level_bboxes:
            lvl = distances[:, :, start:start + nb]
            k = min(self.topk, nb)
            _, idxs = jax.lax.top_k(-lvl, k)                        # smallest-k
            topk_idx_list.append(idxs + start)
            idxs_masked = jnp.where(mask[:, :, :k], idxs, 0)
            onehot = jax.nn.one_hot(idxs_masked, nb, dtype=jnp.float32).sum(axis=-2)
            onehot = jnp.where(onehot > 1, 0.0, onehot)
            is_in_topk_list.append(onehot)
            start += nb
        return (jnp.concatenate(is_in_topk_list, axis=-1),
                jnp.concatenate(topk_idx_list, axis=-1))

    def _overlaps_threshold(self, is_in_topk, topk_idxs, overlaps):
        # mean + unbiased std of the gathered candidate overlaps (torch semantics)
        bs, M, N = overlaps.shape
        idx = topk_idxs.reshape(bs * M, -1)
        cand_ov = jnp.take_along_axis(overlaps.reshape(bs * M, N), idx, axis=-1)
        cand_tk = jnp.take_along_axis(is_in_topk.reshape(bs * M, N), idx, axis=-1)
        cand = (cand_ov * cand_tk).reshape(bs, M, -1)
        mean = cand.mean(axis=-1, keepdims=True)
        std = jnp.std(cand, axis=-1, ddof=1, keepdims=True)
        return mean + std                                          # [bs, M, 1]

    def _get_final_assignments(self, gt_labels, gt_bboxes, assigned_gt_idx,
                               mask_pos_sum):
        bs, M = gt_bboxes.shape[:2]
        N = assigned_gt_idx.shape[1]
        batch_idx = jnp.arange(bs, dtype=jnp.int32)[:, None]
        flat_idx = (assigned_gt_idx + batch_idx * M).reshape(-1)
        assigned_labels = gt_labels.reshape(-1)[flat_idx].reshape(bs, N)
        assigned_labels = jnp.where(mask_pos_sum > 0, assigned_labels, self.n_classes)
        assigned_bboxes = gt_bboxes.reshape(-1, 4)[flat_idx].reshape(bs, N, 4)
        assigned_scores = jax.nn.one_hot(assigned_labels, self.n_classes + 1,
                                         dtype=jnp.float32)[:, :, :self.n_classes]
        return assigned_labels, assigned_bboxes, assigned_scores


# ----------------------------------------------------------------------------
# Pure-JAX reference (torch formulation) used as a correctness check.
# ----------------------------------------------------------------------------
def _iou_matrix(a, b):
    a = a[:, None, :]
    b = b[None, :, :]
    iw = jnp.maximum(jnp.minimum(a[..., 2], b[..., 2]) - jnp.maximum(a[..., 0], b[..., 0]), 0.0)
    ih = jnp.maximum(jnp.minimum(a[..., 3], b[..., 3]) - jnp.maximum(a[..., 1], b[..., 1]), 0.0)
    inter = iw * ih
    area_a = (a[..., 2] - a[..., 0]) * (a[..., 3] - a[..., 1])
    area_b = (b[..., 2] - b[..., 0]) * (b[..., 3] - b[..., 1])
    return inter / (area_a + area_b - inter + EPS)


def reference_forward(assigner, anchor_bboxes, n_level_bboxes, gt_labels,
                      gt_bboxes, mask_gt, pred_bboxes):
    n_anchors = anchor_bboxes.shape[0]
    bs, M = gt_bboxes.shape[:2]
    gt_flat = gt_bboxes.reshape(-1, 4)

    overlaps = _iou_matrix(gt_flat, anchor_bboxes).reshape(bs, M, n_anchors)
    gt_c = (gt_flat[:, :2] + gt_flat[:, 2:]) * 0.5
    an_c = (anchor_bboxes[:, :2] + anchor_bboxes[:, 2:]) * 0.5
    dist2 = jnp.sum((gt_c[:, None, :] - an_c[None, :, :]) ** 2, axis=-1)
    dist2 = dist2.reshape(bs, M, n_anchors)

    is_in_topk, topk_idxs = assigner._select_topk_candidates(
        dist2, n_level_bboxes, mask_gt)

    cand_full = jnp.where(is_in_topk > 0, overlaps, 0.0)
    idx = topk_idxs.reshape(bs * M, -1)
    cand = jnp.take_along_axis(cand_full.reshape(bs * M, n_anchors), idx, axis=-1)
    cand = cand.reshape(bs, M, -1)
    thr = cand.mean(-1, keepdims=True) + jnp.std(cand, axis=-1, ddof=1, keepdims=True)
    is_pos = jnp.where(cand_full > thr, is_in_topk, 0.0)

    lt = an_c[None, :, :] - gt_flat[:, None, :2]
    rb = gt_flat[:, None, 2:] - an_c[None, :, :]
    in_gts = (jnp.min(jnp.concatenate([lt, rb], axis=-1), axis=-1) > EPS)
    in_gts = in_gts.astype(jnp.float32).reshape(bs, M, n_anchors)

    mask_pos = is_pos * in_gts * mask_gt.astype(jnp.float32)
    mps = mask_pos.sum(axis=1)
    multi = jnp.broadcast_to(mps[:, None, :] > 1, mask_pos.shape)
    is_max_ov = jax.nn.one_hot(jnp.argmax(overlaps, axis=1), M, dtype=jnp.float32)
    is_max_ov = jnp.transpose(is_max_ov, (0, 2, 1))
    mask_pos = jnp.where(multi, is_max_ov, mask_pos)
    mps = mask_pos.sum(axis=1)
    agi = jnp.argmax(mask_pos, axis=1).astype(jnp.int32)

    labels, bboxes, scores = assigner._get_final_assignments(
        gt_labels, gt_bboxes, agi, mps)
    pb_iou = jax.vmap(_iou_matrix)(gt_bboxes, pred_bboxes)
    iou_max = (pb_iou * mask_pos).max(axis=1)
    scores = scores * iou_max[..., None]
    return labels, bboxes, scores, mps > 0, agi


# ----------------------------------------------------------------------------
# Example inputs / driver
# ----------------------------------------------------------------------------
def make_anchors():
    boxes, n_level = [], []
    for gw, gh, stride in [(32, 32, 8.0), (16, 16, 16.0)]:
        xs = (jnp.arange(gw, dtype=jnp.float32) + 0.5) * stride
        ys = (jnp.arange(gh, dtype=jnp.float32) + 0.5) * stride
        cx, cy = jnp.meshgrid(xs, ys, indexing="xy")
        cx = cx.reshape(-1)
        cy = cy.reshape(-1)
        half = stride * 2.0
        boxes.append(jnp.stack([cx - half, cy - half, cx + half, cy + half], axis=-1))
        n_level.append(gw * gh)
    return jnp.concatenate(boxes, axis=0), n_level


if __name__ == "__main__":
    n_classes, topk = 8, 9
    bs, n_max_boxes = 2, 4

    anchor_bboxes, n_level_bboxes = make_anchors()          # [1280, 4], [1024, 256]
    n_anchors = anchor_bboxes.shape[0]

    key = jax.random.PRNGKey(0)
    k1, k2, k3, k4 = jax.random.split(key, 4)
    centers = jax.random.uniform(k1, (bs, n_max_boxes, 2), minval=32.0, maxval=224.0)
    sizes = jax.random.uniform(k2, (bs, n_max_boxes, 2), minval=16.0, maxval=80.0)
    gt_bboxes = jnp.concatenate([centers - sizes / 2, centers + sizes / 2], axis=-1)
    mask_gt = jnp.array([[1.0, 1.0, 1.0, 0.0],
                         [1.0, 1.0, 0.0, 0.0]], dtype=jnp.float32)[..., None]
    gt_bboxes = gt_bboxes * mask_gt
    gt_labels = jax.random.randint(k3, (bs, n_max_boxes, 1), 0, n_classes).astype(jnp.int32)
    gt_labels = gt_labels * mask_gt.astype(jnp.int32)
    pred_noise = jax.random.uniform(k4, (bs, n_anchors, 4), minval=-2.0, maxval=2.0)
    pred_bboxes = anchor_bboxes[None, :, :] + pred_noise

    assigner = ATSSAssignerPallas(n_classes=n_classes, topk=topk)
    outs = assigner(anchor_bboxes, n_level_bboxes, gt_labels, gt_bboxes,
                    mask_gt, pred_bboxes)
    outs = jax.block_until_ready(outs)

    labels, bboxes, scores, pos_mask, gt_idx = outs
    assert labels.shape == (bs, n_anchors)
    assert bboxes.shape == (bs, n_anchors, 4)
    assert scores.shape == (bs, n_anchors, n_classes)
    assert pos_mask.shape == (bs, n_anchors)
    assert gt_idx.shape == (bs, n_anchors)
    assert bool(jnp.all(jnp.isfinite(scores)))
    assert bool(jnp.all((gt_idx >= 0) & (gt_idx < n_max_boxes)))

    # numeric check against the plain-JAX (torch-formulation) reference;
    # tolerate a tiny fraction of tie-break flips from ulp-level differences.
    ref_outs = jax.block_until_ready(reference_forward(
        assigner, anchor_bboxes, n_level_bboxes, gt_labels, gt_bboxes,
        mask_gt, pred_bboxes))
    for name, a, b in zip(["labels", "bboxes", "scores", "pos_mask", "gt_idx"],
                          outs, ref_outs):
        a_f = jnp.asarray(a).astype(jnp.float32)
        b_f = jnp.asarray(b).astype(jnp.float32)
        mismatch = float(jnp.mean((jnp.abs(a_f - b_f) > 1e-4).astype(jnp.float32)))
        assert mismatch < 5e-3, (name, mismatch)

    print("KERNEL_OK")
</pallas_src>

<mosaic_0001>
module attributes {stable_mosaic.version = 11 : i64} {
  func.func @_geometry_kernel(%arg0: i32, %arg1: memref<8x1xf32, #tpu.memory_space<vmem>>, %arg2: memref<8x1xf32, #tpu.memory_space<vmem>>, %arg3: memref<8x1xf32, #tpu.memory_space<vmem>>, %arg4: memref<8x1xf32, #tpu.memory_space<vmem>>, %arg5: memref<1x256xf32, #tpu.memory_space<vmem>>, %arg6: memref<1x256xf32, #tpu.memory_space<vmem>>, %arg7: memref<1x256xf32, #tpu.memory_space<vmem>>, %arg8: memref<1x256xf32, #tpu.memory_space<vmem>>, %arg9: memref<8x256xf32, #tpu.memory_space<vmem>>, %arg10: memref<8x256xf32, #tpu.memory_space<vmem>>) attributes {dimension_semantics = [#tpu.dimension_semantics<parallel>], iteration_bounds = array<i64: 5>, scalar_prefetch = 0 : i64, scratch_operands = 0 : i64, tpu.core_type = #tpu.core_type<tc>, window_params = [{pipeline_mode = #tpu.pipeline_mode<synchronous>, transform_indices = @transform_0, window_bounds = array<i64: 8, 1>}, {pipeline_mode = #tpu.pipeline_mode<synchronous>, transform_indices = @transform_1, window_bounds = array<i64: 8, 1>}, {pipeline_mode = #tpu.pipeline_mode<synchronous>, transform_indices = @transform_2, window_bounds = array<i64: 8, 1>}, {pipeline_mode = #tpu.pipeline_mode<synchronous>, transform_indices = @transform_3, window_bounds = array<i64: 8, 1>}, {transform_indices = @transform_4, window_bounds = array<i64: 1, 256>}, {transform_indices = @transform_5, window_bounds = array<i64: 1, 256>}, {transform_indices = @transform_6, window_bounds = array<i64: 1, 256>}, {transform_indices = @transform_7, window_bounds = array<i64: 1, 256>}, {transform_indices = @transform_8, window_bounds = array<i64: 8, 256>}, {transform_indices = @transform_9, window_bounds = array<i64: 8, 256>}]} {
    %c0 = arith.constant 0 : index
    %c0_0 = arith.constant 0 : index
    %0 = vector.load %arg1[%c0, %c0_0] : memref<8x1xf32, #tpu.memory_space<vmem>>, vector<8x1xf32>
    %c0_1 = arith.constant 0 : index
    %c0_2 = arith.constant 0 : index
    %1 = vector.load %arg2[%c0_1, %c0_2] : memref<8x1xf32, #tpu.memory_space<vmem>>, vector<8x1xf32>
    %c0_3 = arith.constant 0 : index
    %c0_4 = arith.constant 0 : index
    %2 = vector.load %arg3[%c0_3, %c0_4] : memref<8x1xf32, #tpu.memory_space<vmem>>, vector<8x1xf32>
    %c0_5 = arith.constant 0 : index
    %c0_6 = arith.constant 0 : index
    %3 = vector.load %arg4[%c0_5, %c0_6] : memref<8x1xf32, #tpu.memory_space<vmem>>, vector<8x1xf32>
    %c0_7 = arith.constant 0 : index
    %c0_8 = arith.constant 0 : index
    %4 = vector.load %arg5[%c0_7, %c0_8] : memref<1x256xf32, #tpu.memory_space<vmem>>, vector<1x256xf32>
    %c0_9 = arith.constant 0 : index
    %c0_10 = arith.constant 0 : index
    %5 = vector.load %arg6[%c0_9, %c0_10] : memref<1x256xf32, #tpu.memory_space<vmem>>, vector<1x256xf32>
    %c0_11 = arith.constant 0 : index
    %c0_12 = arith.constant 0 : index
    %6 = vector.load %arg7[%c0_11, %c0_12] : memref<1x256xf32, #tpu.memory_space<vmem>>, vector<1x256xf32>
    %c0_13 = arith.constant 0 : index
    %c0_14 = arith.constant 0 : index
    %7 = vector.load %arg8[%c0_13, %c0_14] : memref<1x256xf32, #tpu.memory_space<vmem>>, vector<1x256xf32>
    %8 = arith.subf %2, %0 : vector<8x1xf32>
    %9 = arith.subf %3, %1 : vector<8x1xf32>
    %10 = arith.mulf %8, %9 : vector<8x1xf32>
    %11 = arith.subf %6, %4 : vector<1x256xf32>
    %12 = arith.subf %7, %5 : vector<1x256xf32>
    %13 = arith.mulf %11, %12 : vector<1x256xf32>
    %14 = vector.broadcast %2 : vector<8x1xf32> to vector<8x256xf32>
    %15 = vector.broadcast %6 : vector<1x256xf32> to vector<8x256xf32>
    %16 = arith.minimumf %14, %15 : vector<8x256xf32>
    %17 = vector.broadcast %0 : vector<8x1xf32> to vector<8x256xf32>
    %18 = vector.broadcast %4 : vector<1x256xf32> to vector<8x256xf32>
    %19 = arith.maximumf %17, %18 : vector<8x256xf32>
    %20 = arith.subf %16, %19 : vector<8x256xf32>
    %cst = arith.constant 0.000000e+00 : f32
    %21 = vector.broadcast %cst : f32 to vector<8x256xf32>
    %22 = arith.maximumf %20, %21 : vector<8x256xf32>
    %23 = vector.broadcast %3 : vector<8x1xf32> to vector<8x256xf32>
    %24 = vector.broadcast %7 : vector<1x256xf32> to vector<8x256xf32>
    %25 = arith.minimumf %23, %24 : vector<8x256xf32>
    %26 = vector.broadcast %1 : vector<8x1xf32> to vector<8x256xf32>
    %27 = vector.broadcast %5 : vector<1x256xf32> to vector<8x256xf32>
    %28 = arith.maximumf %26, %27 : vector<8x256xf32>
    %29 = arith.subf %25, %28 : vector<8x256xf32>
    %cst_15 = arith.constant 0.000000e+00 : f32
    %30 = vector.broadcast %cst_15 : f32 to vector<8x256xf32>
    %31 = arith.maximumf %29, %30 : vector<8x256xf32>
    %32 = arith.mulf %22, %31 : vector<8x256xf32>
    %33 = vector.broadcast %10 : vector<8x1xf32> to vector<8x256xf32>
    %34 = vector.broadcast %13 : vector<1x256xf32> to vector<8x256xf32>
    %35 = arith.addf %33, %34 : vector<8x256xf32>
    %36 = arith.subf %35, %32 : vector<8x256xf32>
    %cst_16 = arith.constant 9.99999971E-10 : f32
    %37 = vector.broadcast %cst_16 : f32 to vector<8x256xf32>
    %38 = arith.addf %36, %37 : vector<8x256xf32>
    %39 = arith.divf %32, %38 : vector<8x256xf32>
    %c0_17 = arith.constant 0 : index
    %c0_18 = arith.constant 0 : index
    %40 = vector.load %arg9[%c0_17, %c0_18] : memref<8x256xf32, #tpu.memory_space<vmem>>, vector<8x256xf32>
    tpu.vector_store %arg9[%c0_17, %c0_18], %39 {strides = array<i32>} : memref<8x256xf32, #tpu.memory_space<vmem>>, vector<8x256xf32>,
    %41 = arith.addf %0, %2 : vector<8x1xf32>
    %cst_19 = arith.constant 5.000000e-01 : f32
    %42 = vector.broadcast %cst_19 : f32 to vector<8x1xf32>
    %43 = arith.mulf %41, %42 : vector<8x1xf32>
    %44 = arith.addf %4, %6 : vector<1x256xf32>
    %cst_20 = arith.constant 5.000000e-01 : f32
    %45 = vector.broadcast %cst_20 : f32 to vector<1x256xf32>
    %46 = arith.mulf %44, %45 : vector<1x256xf32>
    %47 = vector.broadcast %43 : vector<8x1xf32> to vector<8x256xf32>
    %48 = vector.broadcast %46 : vector<1x256xf32> to vector<8x256xf32>
    %49 = arith.subf %47, %48 : vector<8x256xf32>
    %50 = arith.addf %1, %3 : vector<8x1xf32>
    %cst_21 = arith.constant 5.000000e-01 : f32
    %51 = vector.broadcast %cst_21 : f32 to vector<8x1xf32>
    %52 = arith.mulf %50, %51 : vector<8x1xf32>
    %53 = arith.addf %5, %7 : vector<1x256xf32>
    %cst_22 = arith.constant 5.000000e-01 : f32
    %54 = vector.broadcast %cst_22 : f32 to vector<1x256xf32>
    %55 = arith.mulf %53, %54 : vector<1x256xf32>
    %56 = vector.broadcast %52 : vector<8x1xf32> to vector<8x256xf32>
    %57 = vector.broadcast %55 : vector<1x256xf32> to vector<8x256xf32>
    %58 = arith.subf %56, %57 : vector<8x256xf32>
    %59 = arith.mulf %49, %49 : vector<8x256xf32>
    %60 = arith.mulf %58, %58 : vector<8x256xf32>
    %61 = arith.addf %59, %60 : vector<8x256xf32>
    %c0_23 = arith.constant 0 : index
    %c0_24 = arith.constant 0 : index
    %62 = vector.load %arg10[%c0_23, %c0_24] : memref<8x256xf32, #tpu.memory_space<vmem>>, vector<8x256xf32>
    tpu.vector_store %arg10[%c0_23, %c0_24], %61 {strides = array<i32>} : memref<8x256xf32, #tpu.memory_space<vmem>>, vector<8x256xf32>,
    return
  }
  func.func @transform_0(%arg0: i32) -> (i32, i32) {
    %c0_i32 = arith.constant 0 : i32
    %c0_i32_0 = arith.constant 0 : i32
    %c0_i32_1 = arith.constant 0 : i32
    return %c0_i32, %c0_i32_0 : i32, i32
  }
  func.func @transform_1(%arg0: i32) -> (i32, i32) {
    %c0_i32 = arith.constant 0 : i32
    %c0_i32_0 = arith.constant 0 : i32
    %c0_i32_1 = arith.constant 0 : i32
    return %c0_i32, %c0_i32_0 : i32, i32
  }
  func.func @transform_2(%arg0: i32) -> (i32, i32) {
    %c0_i32 = arith.constant 0 : i32
    %c0_i32_0 = arith.constant 0 : i32
    %c0_i32_1 = arith.constant 0 : i32
    return %c0_i32, %c0_i32_0 : i32, i32
  }
  func.func @transform_3(%arg0: i32) -> (i32, i32) {
    %c0_i32 = arith.constant 0 : i32
    %c0_i32_0 = arith.constant 0 : i32
    %c0_i32_1 = arith.constant 0 : i32
    return %c0_i32, %c0_i32_0 : i32, i32
  }
  func.func @transform_4(%arg0: i32) -> (i32, i32) {
    %c0_i32 = arith.constant 0 : i32
    %c0_i32_0 = arith.constant 0 : i32
    return %c0_i32, %arg0 : i32, i32
  }
  func.func @transform_5(%arg0: i32) -> (i32, i32) {
    %c0_i32 = arith.constant 0 : i32
    %c0_i32_0 = arith.constant 0 : i32
    return %c0_i32, %arg0 : i32, i32
  }
  func.func @transform_6(%arg0: i32) -> (i32, i32) {
    %c0_i32 = arith.constant 0 : i32
    %c0_i32_0 = arith.constant 0 : i32
    return %c0_i32, %arg0 : i32, i32
  }
  func.func @transform_7(%arg0: i32) -> (i32, i32) {
    %c0_i32 = arith.constant 0 : i32
    %c0_i32_0 = arith.constant 0 : i32
    return %c0_i32, %arg0 : i32, i32
  }
  func.func @transform_8(%arg0: i32) -> (i32, i32) {
    %c0_i32 = arith.constant 0 : i32
    %c0_i32_0 = arith.constant 0 : i32
    return %c0_i32, %arg0 : i32, i32
  }
  func.func @transform_9(%arg0: i32) -> (i32, i32) {
    %c0_i32 = arith.constant 0 : i32
    %c0_i32_0 = arith.constant 0 : i32
    return %c0_i32, %arg0 : i32, i32
  }
}

</mosaic_0001>

<llo_original>
// kernel: tpu_custom_call.1
$region0: #{tpu_custom_call.1}
  #allocation0 [shape = 'u32[]', space=smem, size = 0x4, offset = 0x4, fixed_abs, tag = 'smem constant byte address 0x4 - core index']
  #allocation1 [shape = 'u32[72,128]{1,0:T(1,128)}', space=vmem, size = 0x9000, scoped, tag = 'internal scratch']
  %s0 = inlined_call_operand.vmem [shape: f32[8,1], index: 0, kind: input, shape index: {}]
  %s1 = inlined_call_operand.vmem [shape: f32[8,1], index: 1, kind: input, shape index: {}]
  %s2 = inlined_call_operand.vmem [shape: f32[8,1], index: 2, kind: input, shape index: {}]
  %s3 = inlined_call_operand.vmem [shape: f32[8,1], index: 3, kind: input, shape index: {}]
  %s4 = inlined_call_operand.vmem [shape: f32[1,1280], index: 4, kind: input, shape index: {}]
  %s5 = inlined_call_operand.vmem [shape: f32[1,1280], index: 5, kind: input, shape index: {}]
  %s6 = inlined_call_operand.vmem [shape: f32[1,1280], index: 6, kind: input, shape index: {}]
  %s7 = inlined_call_operand.hbm [shape: f32[1,1280], index: 7, kind: input, shape index: {}]
  %s8 = inlined_call_operand.hbm [shape: f32[8,1280], index: 8, kind: output, shape index: {0}]
  %s9 = inlined_call_operand.hbm [shape: f32[8,1280], index: 9, kind: output, shape index: {1}]
  %10 = xla_tuple %s8, %s9
  %s11 = sld [smem:[#allocation0]]
  $region77: #{tpu_custom_call.1} parent=0
    _
  %s13 = ssub.s32 1, %s11
  %s14 = scalar_select 0, %s13, %s11
  $region1: #{tpu_custom_call.1} parent=0
    #allocation2 [shape = 'u8[2048]{0}', space=vmem, size = 0x800, scoped, tag = 'input window, operand 7']
    #allocation3 [shape = 's32[2]{0}', space=sflag, size = 0x8, scoped, tag = 'scoped memory for tpu_custom_call.1']
    #allocation4 [shape = 's32[2]{0}', space=sflag, size = 0x8, scoped, tag = 'scoped memory for tpu_custom_call.1']
    #allocation5 [shape = 'u8[16384]{0}', space=vmem, size = 0x4000, scoped, tag = 'output window, operand 0']
    #allocation6 [shape = 'u8[16384]{0}', space=vmem, size = 0x4000, scoped, tag = 'output window, operand 1']
    #allocation7 [shape = 's32[2]{0}', space=sflag, size = 0x8, scoped, tag = 'scoped memory for tpu_custom_call.1']
    %15 = vsyncpa [#allocation3], 0
    %s16 = scalar_lea.sflag [#allocation3], 1
    %17 = vsyncpa %s16, 0
    %18 = vsyncpa [#allocation4], 0
    %s19 = scalar_lea.sflag [#allocation4], 1
    %20 = vsyncpa %s19, 0
    %21 = vsyncpa [#allocation7], 0
    %s22 = scalar_lea.sflag [#allocation7], 1
    %23 = vsyncpa %s22, 0
    loop: start=0, step=1, limit=7
    $region2: #{tpu_custom_call.1} parent=1 // loop_pre_header
      _
    $region3: #{tpu_custom_call.1} parent=1 // loop_header
      %s25 = sphi 0, %s29
      %p26 = scmp.ge.s32.totalorder %s25, 7
      %s33 = sphi 0, %s33
      %s35 = sphi 0, %s33
      %s36 = sphi 0, %s35
      %s50 = sphi 0, %s36
      %s54 = sphi 0, %s54
      %s56 = sphi 0, %s54
      %s57 = sphi 0, %s56
      %s71 = sphi 0, %s57
      %s75 = sphi 0, %s75
      %s77 = sphi 0, %s75
      %s78 = sphi 0, %s77
      %s92 = sphi 0, %s78
      %s96 = sphi 0, %s96
      %s98 = sphi 0, %s96
      %s99 = sphi 0, %s98
      %s113 = sphi 0, %s99
      %s119 = sphi 0, %s121
      %s122 = sphi 0, %s119
      %s123 = sphi 0, %s122
      %s139 = sphi 0, %s123
      %s145 = sphi 0, %s147
      %s148 = sphi 0, %s145
      %s149 = sphi 0, %s148
      %s165 = sphi 0, %s149
      %s171 = sphi 0, %s173
      %s174 = sphi 0, %s171
      %s175 = sphi 0, %s174
      %s191 = sphi 0, %s175
      %s197 = sphi 0, %s199
      %s200 = sphi 0, %s197
      %s201 = sphi 0, %s200
      %s217 = sphi 0, %s201
      %s223 = sphi 0, %s225
      %s226 = sphi 0, %s223
      %s227 = sphi 0, %s226
      %s243 = sphi 0, %s227
      %s249 = sphi 0, %s251
      %s252 = sphi 0, %s249
      %s253 = sphi 0, %s252
      %s269 = sphi 0, %s253
    $region4: #{tpu_custom_call.1} parent=1 // loop_header_branch
      %28 = sbr.rel (%p26) target = $region8
    $region5: #{tpu_custom_call.1} parent=1 // loop_body
      %s30 = ssub.s32 %s25, 1
      %s31 = ssub.s32 %s25, 2
      %s32 = sadd.s32 %s25, 1
      %s34 = sadd.s32 %s33, 1
      %p37 = scmp.eq.s32.totalorder %s25, 4
      %p38 = scmp.ne.s32.totalorder %s33, %s35
      %p39 = scmp.eq.s32.totalorder %s25, 0
      %p40 = por %p38, %p39
      %p41 = scmp.ne.s32.totalorder %s33, %s35
      %p42 = scmp.eq.s32.totalorder %s30, 4
      %p43 = por %p41, %p42
      %p44 = scmp.ne.s32.totalorder %s35, %s36
      %p45 = scmp.eq.s32.totalorder %s30, 0
      %p46 = por %p44, %p45
      %p47 = scmp.ne.s32.totalorder %s35, %s36
      %p48 = scmp.eq.s32.totalorder %s31, 4
      %p49 = por %p47, %p48
      %p51 = scmp.ne.s32.totalorder %s36, %s50
      %p52 = scmp.eq.s32.totalorder %s31, 0
      %p53 = por %p51, %p52
      %s55 = sadd.s32 %s54, 1
      %p58 = scmp.eq.s32.totalorder %s25, 4
      %p59 = scmp.ne.s32.totalorder %s54, %s56
      %p60 = scmp.eq.s32.totalorder %s25, 0
      %p61 = por %p59, %p60
      %p62 = scmp.ne.s32.totalorder %s54, %s56
      %p63 = scmp.eq.s32.totalorder %s30, 4
      %p64 = por %p62, %p63
      %p65 = scmp.ne.s32.totalorder %s56, %s57
      %p66 = scmp.eq.s32.totalorder %s30, 0
      %p67 = por %p65, %p66
      %p68 = scmp.ne.s32.totalorder %s56, %s57
      %p69 = scmp.eq.s32.totalorder %s31, 4
      %p70 = por %p68, %p69
      %p72 = scmp.ne.s32.totalorder %s57, %s71
      %p73 = scmp.eq.s32.totalorder %s31, 0
      %p74 = por %p72, %p73
      %s76 = sadd.s32 %s75, 1
      %p79 = scmp.eq.s32.totalorder %s25, 4
      %p80 = scmp.ne.s32.totalorder %s75, %s77
      %p81 = scmp.eq.s32.totalorder %s25, 0
      %p82 = por %p80, %p81
      %p83 = scmp.ne.s32.totalorder %s75, %s77
      %p84 = scmp.eq.s32.totalorder %s30, 4
      %p85 = por %p83, %p84
      %p86 = scmp.ne.s32.totalorder %s77, %s78
      %p87 = scmp.eq.s32.totalorder %s30, 0
      %p88 = por %p86, %p87
      %p89 = scmp.ne.s32.totalorder %s77, %s78
      %p90 = scmp.eq.s32.totalorder %s31, 4
      %p91 = por %p89, %p90
      %p93 = scmp.ne.s32.totalorder %s78, %s92
      %p94 = scmp.eq.s32.totalorder %s31, 0
      %p95 = por %p93, %p94
      %s97 = sadd.s32 %s96, 1
      %p100 = scmp.eq.s32.totalorder %s25, 4
      %p101 = scmp.ne.s32.totalorder %s96, %s98
      %p102 = scmp.eq.s32.totalorder %s25, 0
      %p103 = por %p101, %p102
      %p104 = scmp.ne.s32.totalorder %s96, %s98
      %p105 = scmp.eq.s32.totalorder %s30, 4
      %p106 = por %p104, %p105
      %p107 = scmp.ne.s32.totalorder %s98, %s99
      %p108 = scmp.eq.s32.totalorder %s30, 0
      %p109 = por %p107, %p108
      %p110 = scmp.ne.s32.totalorder %s98, %s99
      %p111 = scmp.eq.s32.totalorder %s31, 4
      %p112 = por %p110, %p111
      %p114 = scmp.ne.s32.totalorder %s99, %s113
      %p115 = scmp.eq.s32.totalorder %s31, 0
      %p116 = por %p114, %p115
      %s117 = ssub.s32 %s25, %s32
      %p118 = scmp.eq.s32.totalorder %s117, 0
      %s120 = sadd.s32 %s119, 1
      %s121 = scalar_select %p118, %s119, %s120
      %p124 = pneg %p118
      %p125 = scmp.eq.s32.totalorder %s25, 4
      %p126 = por %p124, %p125
      %p127 = scmp.ne.s32.totalorder %s119, %s122
      %p128 = scmp.eq.s32.totalorder %s25, 0
      %p129 = por %p127, %p128
      %p130 = scmp.ne.s32.totalorder %s119, %s122
      %p131 = scmp.eq.s32.totalorder %s30, 4
      %p132 = por %p130, %p131
      %p133 = scmp.ne.s32.totalorder %s122, %s123
      %p134 = scmp.eq.s32.totalorder %s30, 0
      %p135 = por %p133, %p134
      %p136 = scmp.ne.s32.totalorder %s122, %s123
      %p137 = scmp.eq.s32.totalorder %s31, 4
      %p138 = por %p136, %p137
      %p140 = scmp.ne.s32.totalorder %s123, %s139
      %p141 = scmp.eq.s32.totalorder %s31, 0
      %p142 = por %p140, %p141
      %s143 = ssub.s32 %s25, %s32
      %p144 = scmp.eq.s32.totalorder %s143, 0
      %s146 = sadd.s32 %s145, 1
      %s147 = scalar_select %p144, %s145, %s146
      %p150 = pneg %p144
      %p151 = scmp.eq.s32.totalorder %s25, 4
      %p152 = por %p150, %p151
      %p153 = scmp.ne.s32.totalorder %s145, %s148
      %p154 = scmp.eq.s32.totalorder %s25, 0
      %p155 = por %p153, %p154
      %p156 = scmp.ne.s32.totalorder %s145, %s148
      %p157 = scmp.eq.s32.totalorder %s30, 4
      %p158 = por %p156, %p157
      %p159 = scmp.ne.s32.totalorder %s148, %s149
      %p160 = scmp.eq.s32.totalorder %s30, 0
      %p161 = por %p159, %p160
      %p162 = scmp.ne.s32.totalorder %s148, %s149
      %p163 = scmp.eq.s32.totalorder %s31, 4
      %p164 = por %p162, %p163
      %p166 = scmp.ne.s32.totalorder %s149, %s165
      %p167 = scmp.eq.s32.totalorder %s31, 0
      %p168 = por %p166, %p167
      %s169 = ssub.s32 %s25, %s32
      %p170 = scmp.eq.s32.totalorder %s169, 0
      %s172 = sadd.s32 %s171, 1
      %s173 = scalar_select %p170, %s171, %s172
      %p176 = pneg %p170
      %p177 = scmp.eq.s32.totalorder %s25, 4
      %p178 = por %p176, %p177
      %p179 = scmp.ne.s32.totalorder %s171, %s174
      %p180 = scmp.eq.s32.totalorder %s25, 0
      %p181 = por %p179, %p180
      %p182 = scmp.ne.s32.totalorder %s171, %s174
      %p183 = scmp.eq.s32.totalorder %s30, 4
      %p184 = por %p182, %p183
      %p185 = scmp.ne.s32.totalorder %s174, %s175
      %p186 = scmp.eq.s32.totalorder %s30, 0
      %p187 = por %p185, %p186
      %p188 = scmp.ne.s32.totalorder %s174, %s175
      %p189 = scmp.eq.s32.totalorder %s31, 4
      %p190 = por %p188, %p189
      %p192 = scmp.ne.s32.totalorder %s175, %s191
      %p193 = scmp.eq.s32.totalorder %s31, 0
      %p194 = por %p192, %p193
      %s195 = ssub.s32 %s25, %s32
      %p196 = scmp.eq.s32.totalorder %s195, 0
      %s198 = sadd.s32 %s197, 1
      %s199 = scalar_select %p196, %s197, %s198
      %p202 = pneg %p196
      %p203 = scmp.eq.s32.totalorder %s25, 4
      %p204 = por %p202, %p203
      %p205 = scmp.ne.s32.totalorder %s197, %s200
      %p206 = scmp.eq.s32.totalorder %s25, 0
      %p207 = por %p205, %p206
      %p208 = scmp.ne.s32.totalorder %s197, %s200
      %p209 = scmp.eq.s32.totalorder %s30, 4
      %p210 = por %p208, %p209
      %p211 = scmp.ne.s32.totalorder %s200, %s201
      %p212 = scmp.eq.s32.totalorder %s30, 0
      %p213 = por %p211, %p212
      %p214 = scmp.ne.s32.totalorder %s200, %s201
      %p215 = scmp.eq.s32.totalorder %s31, 4
      %p216 = por %p214, %p215
      %p218 = scmp.ne.s32.totalorder %s201, %s217
      %p219 = scmp.eq.s32.totalorder %s31, 0
      %p220 = por %p218, %p219
      %s221 = ssub.s32 %s25, %s32
      %p222 = scmp.eq.s32.totalorder %s221, 0
      %s224 = sadd.s32 %s223, 1
      %s225 = scalar_select %p222, %s223, %s224
      %p228 = pneg %p222
      %p229 = scmp.eq.s32.totalorder %s25, 4
      %p230 = por %p228, %p229
      %p231 = scmp.ne.s32.totalorder %s223, %s226
      %p232 = scmp.eq.s32.totalorder %s25, 0
      %p233 = por %p231, %p232
      %p234 = scmp.ne.s32.totalorder %s223, %s226
      %p235 = scmp.eq.s32.totalorder %s30, 4
      %p236 = por %p234, %p235
      %p237 = scmp.ne.s32.totalorder %s226, %s227
      %p238 = scmp.eq.s32.totalorder %s30, 0
      %p239 = por %p237, %p238
      %p240 = scmp.ne.s32.totalorder %s226, %s227
      %p241 = scmp.eq.s32.totalorder %s31, 4
      %p242 = por %p240, %p241
      %p244 = scmp.ne.s32.totalorder %s227, %s243
      %p245 = scmp.eq.s32.totalorder %s31, 0
      %p246 = por %p244, %p245
      %s247 = ssub.s32 %s25, %s32
      %p248 = scmp.eq.s32.totalorder %s247, 0
      %s250 = sadd.s32 %s249, 1
      %s251 = scalar_select %p248, %s249, %s250
      %p254 = pneg %p248
      %p255 = scmp.eq.s32.totalorder %s25, 4
      %p256 = por %p254, %p255
      %p257 = scmp.ne.s32.totalorder %s249, %s252
      %p258 = scmp.eq.s32.totalorder %s25, 0
      %p259 = por %p257, %p258
      %p260 = scmp.ne.s32.totalorder %s249, %s252
      %p261 = scmp.eq.s32.totalorder %s30, 4
      %p262 = por %p260, %p261
      %p263 = scmp.ne.s32.totalorder %s252, %s253
      %p264 = scmp.eq.s32.totalorder %s30, 0
      %p265 = por %p263, %p264
      %p266 = scmp.ne.s32.totalorder %s252, %s253
      %p267 = scmp.eq.s32.totalorder %s31, 4
      %p268 = por %p266, %p267
      %p270 = scmp.ne.s32.totalorder %s253, %s269
      %p271 = scmp.eq.s32.totalorder %s31, 0
      %p272 = por %p270, %p271
      %p273 = scmp.le.s32.totalorder 1, %s25
      %p274 = scmp.lt.s32.totalorder %s25, 6
      %p275 = pnand %p273, %p274
      %p276 = pneg %p275
      // Predicated region
      $region9: #{tpu_custom_call.1} parent=5 // pred_check
        _
      $region10: #{tpu_custom_call.1} parent=5 // pred_check_branch
        %278 = sbr.rel (%p275) target = $region12
      $region11: #{tpu_custom_call.1} parent=5 // pred_region
        %s279 = ssub.s32 %s25, 1
        // Predicated region
        $region13: #{tpu_custom_call.1} parent=11 // pred_check
          %p280 = pneg %p46
        $region14: #{tpu_custom_call.1} parent=11 // pred_check_branch
          %282 = sbr.rel (%p280) target = $region16
        $region15: #{tpu_custom_call.1} parent=11 // pred_region
          _
        $region16: #{tpu_custom_call.1} parent=11 // pred_fallthru
          _
        // Predicated region
        $region17: #{tpu_custom_call.1} parent=11 // pred_check
          %p283 = pneg %p67
        $region18: #{tpu_custom_call.1} parent=11 // pred_check_branch
          %285 = sbr.rel (%p283) target = $region20
        $region19: #{tpu_custom_call.1} parent=11 // pred_region
          _
        $region20: #{tpu_custom_call.1} parent=11 // pred_fallthru
          _
        // Predicated region
        $region21: #{tpu_custom_call.1} parent=11 // pred_check
          %p286 = pneg %p88
        $region22: #{tpu_custom_call.1} parent=11 // pred_check_branch
          %288 = sbr.rel (%p286) target = $region24
        $region23: #{tpu_custom_call.1} parent=11 // pred_region
          _
        $region24: #{tpu_custom_call.1} parent=11 // pred_fallthru
          _
        // Predicated region
        $region25: #{tpu_custom_call.1} parent=11 // pred_check
          %p289 = pneg %p109
        $region26: #{tpu_custom_call.1} parent=11 // pred_check_branch
          %291 = sbr.rel (%p289) target = $region28
        $region27: #{tpu_custom_call.1} parent=11 // pred_region
          _
        $region28: #{tpu_custom_call.1} parent=11 // pred_fallthru
          _
      $region12: #{tpu_custom_call.1} parent=5 // pred_fallthru
        _
      %p292 = scmp.lt.s32.totalorder %s25, 5
      // Predicated region
      $region29: #{tpu_custom_call.1} parent=5 // pred_check
        %p293 = pneg %p292
      $region30: #{tpu_custom_call.1} parent=5 // pred_check_branch
        %295 = sbr.rel (%p293) target = $region32
      $region31: #{tpu_custom_call.1} parent=5 // pred_region
        // Predicated region
        $region33: #{tpu_custom_call.1} parent=31 // pred_check
          %p296 = pneg %p129
        $region34: #{tpu_custom_call.1} parent=31 // pred_check_branch
          %298 = sbr.rel (%p296) target = $region36
        $region35: #{tpu_custom_call.1} parent=31 // pred_region
          %s299 = smul.u32 2, %s25
          %p300 = scmp.lt.s32.totalorder %s299, 9
          %s301 = scalar_select %p300, %s299, 9
          %s302 = scalar_lea.vmem %s4, %s301
          %s303 = smul.u32 2, %s25
        $region36: #{tpu_custom_call.1} parent=31 // pred_fallthru
          _
        // Predicated region
        $region37: #{tpu_custom_call.1} parent=31 // pred_check
          %p304 = pneg %p155
        $region38: #{tpu_custom_call.1} parent=31 // pred_check_branch
          %306 = sbr.rel (%p304) target = $region40
        $region39: #{tpu_custom_call.1} parent=31 // pred_region
          %s307 = smul.u32 2, %s25
          %p308 = scmp.lt.s32.totalorder %s307, 9
          %s309 = scalar_select %p308, %s307, 9
          %s310 = scalar_lea.vmem %s5, %s309
          %s311 = smul.u32 2, %s25
        $region40: #{tpu_custom_call.1} parent=31 // pred_fallthru
          _
        // Predicated region
        $region41: #{tpu_custom_call.1} parent=31 // pred_check
          %p312 = pneg %p181
        $region42: #{tpu_custom_call.1} parent=31 // pred_check_branch
          %314 = sbr.rel (%p312) target = $region44
        $region43: #{tpu_custom_call.1} parent=31 // pred_region
          %s315 = smul.u32 2, %s25
          %p316 = scmp.lt.s32.totalorder %s315, 9
          %s317 = scalar_select %p316, %s315, 9
          %s318 = scalar_lea.vmem %s6, %s317
          %s319 = smul.u32 2, %s25
        $region44: #{tpu_custom_call.1} parent=31 // pred_fallthru
          _
        // Predicated region
        $region45: #{tpu_custom_call.1} parent=31 // pred_check
          %p320 = pneg %p207
        $region46: #{tpu_custom_call.1} parent=31 // pred_check_branch
          %322 = sbr.rel (%p320) target = $region48
        $region47: #{tpu_custom_call.1} parent=31 // pred_region
          %s323 = sand.u32 %s197, 1
          %s324 = scalar_lea.sflag [#allocation3], %s323
          %s325 = sand.u32 %s197, 1
          %s326 = smul.addr %s325, 2
          %s327 = scalar_lea.vmem [#allocation2], %s326
          %s328 = smul.u32 2, %s25
          %330 = vsyncadd %s324, 0
          %s331 = scalar_lea.hbm %s7, %s328
          %s333 = sshll.u32 %s331, 4
          %s334 = int_to_ptr.hbm [resolvable:$true] %s333
          %s335 = sshll.u32 %s327, 4
          %s336 = int_to_ptr.vmem [resolvable:$true] %s335
          %338 = dma.hbm_to_vmem [thread:$0]  %s334, 32, %s336, %s324
        $region48: #{tpu_custom_call.1} parent=31 // pred_fallthru
          _
      $region32: #{tpu_custom_call.1} parent=5 // pred_fallthru
        _
      %p339 = scmp.le.s32.totalorder 1, %s25
      %p340 = scmp.lt.s32.totalorder %s25, 6
      %p341 = pnand %p339, %p340
      %p342 = pneg %p341
      // Predicated region
      $region49: #{tpu_custom_call.1} parent=5 // pred_check
        _
      $region50: #{tpu_custom_call.1} parent=5 // pred_check_branch
        %344 = sbr.rel (%p341) target = $region52
      $region51: #{tpu_custom_call.1} parent=5 // pred_region
        %s345 = ssub.s32 %s25, 1
        %s346 = sand.u32 %s200, 1
        %s347 = scalar_lea.sflag [#allocation3], %s346
        %s348 = sand.u32 %s200, 1
        %s349 = smul.addr %s348, 2
        %s350 = scalar_lea.vmem [#allocation2], %s349
        // Predicated region
        $region53: #{tpu_custom_call.1} parent=51 // pred_check
          %p351 = pneg %p213
        $region54: #{tpu_custom_call.1} parent=51 // pred_check_branch
          %353 = sbr.rel (%p351) target = $region56
        $region55: #{tpu_custom_call.1} parent=51 // pred_region
          %355 = dma.done %s347, 32
        $region56: #{tpu_custom_call.1} parent=51 // pred_fallthru
          _
        %p356 = pneg %p46
        %p357 = pneg %p43
        %p358 = pneg %p67
        %p359 = pneg %p64
        %p360 = pneg %p88
        %p361 = pneg %p85
        %p362 = pneg %p109
        %p363 = pneg %p106
        %s364 = smul.u32 2, %s30
        %p365 = scmp.lt.s32.totalorder %s364, 9
        %s366 = scalar_select %p365, %s364, 9
        %s367 = scalar_lea.vmem %s4, %s366
        %p368 = pneg %p135
        %p369 = pneg %p132
        %s370 = smul.u32 2, %s30
        %p371 = scmp.lt.s32.totalorder %s370, 9
        %s372 = scalar_select %p371, %s370, 9
        %s373 = scalar_lea.vmem %s5, %s372
        %p374 = pneg %p161
        %p375 = pneg %p158
        %s376 = smul.u32 2, %s30
        %p377 = scmp.lt.s32.totalorder %s376, 9
        %s378 = scalar_select %p377, %s376, 9
        %s379 = scalar_lea.vmem %s6, %s378
        %p380 = pneg %p187
        %p381 = pneg %p184
        %s382 = sand.u32 %s200, 1
        %s383 = scalar_lea.sflag [#allocation3], %s382
        %s384 = sand.u32 %s200, 1
        %s385 = smul.addr %s384, 2
        %s386 = scalar_lea.vmem [#allocation2], %s385
        %p387 = pneg %p213
        %p388 = pneg %p210
        %p389 = pneg %p239
        %p390 = pneg %p236
        %s391 = sand.u32 %s226, 1
        %s392 = scalar_lea.sflag [#allocation4], %s391
        %s393 = sand.u32 %s226, 1
        %s394 = smul.addr %s393, 16
        %s395 = scalar_lea.vmem [#allocation5], %s394
        %p396 = pneg %p265
        %p397 = pneg %p262
        %s398 = sand.u32 %s252, 1
        %s399 = scalar_lea.sflag [#allocation7], %s398
        %s400 = sand.u32 %s252, 1
        %s401 = smul.addr %s400, 16
        %s402 = scalar_lea.vmem [#allocation6], %s401
        %s403 = smul.u32 2, %s30
        %p404 = scmp.lt.s32.totalorder %s403, 9
        %s405 = scalar_select %p404, %s403, 9
        %s406 = scalar_lea.vmem %s4, %s405
        %s407 = smul.u32 2, %s30
        %s408 = smul.u32 2, %s30
        %p409 = scmp.lt.s32.totalorder %s408, 9
        %s410 = scalar_select %p409, %s408, 9
        %s411 = scalar_lea.vmem %s5, %s410
        %s412 = smul.u32 2, %s30
        %s413 = smul.u32 2, %s30
        %p414 = scmp.lt.s32.totalorder %s413, 9
        %s415 = scalar_select %p414, %s413, 9
        %s416 = scalar_lea.vmem %s6, %s415
        %s417 = smul.u32 2, %s30
        %s418 = smul.u32 2, %s30
        %s419 = smul.u32 2, %s30
        %s420 = smul.u32 2, %s30
        %v421 = vld [vmem:[%s0] sm:$0xff]
        %v422 = vld [vmem:[%s1] sm:$0xff]
        %v423 = vld [vmem:[%s2] sm:$0xff]
        %v424 = vld [vmem:[%s3] sm:$0xff]
        %v425 = vld [vmem:[%s406] sm:$0x3]
        %v426 = vld [vmem:[%s411] sm:$0x3]
        %v427 = vld [vmem:[%s416] sm:$0x3]
        %v428 = vld [vmem:[%s350] sm:$0x3]
        %v429 = vsub.f32 %v423, %v421
        %v430 = vsub.f32 %v424, %v422
        %v431 = vmul.f32 %v429, %v430
        %v432 = vsub.f32 %v427, %v425
        %v433 = vsub.f32 %v428, %v426
        %v434 = vmul.f32 %v432, %v433
        %436 = vset.pattern.permute.xlu0 0
        %437 = vperm.xlu0 %436, %v423
        %v438 = vpop.permute.xlu0 %437
        %v441 = vperm.slane %v427, 0
        %v442 = vperm.slane %v427, 1
        %v445 = vmin.f32 %v438, %v441
        %v446 = vmin.f32 %v438, %v442
        %448 = vset.pattern.permute.xlu0 0
        %449 = vperm.xlu0 %448, %v421
        %v450 = vpop.permute.xlu0 %449
        %v453 = vperm.slane %v425, 0
        %v454 = vperm.slane %v425, 1
        %v457 = vmax.f32 %v450, %v453
        %v458 = vmax.f32 %v450, %v454
        %v459 = vsub.f32 %v445, %v457
        %v460 = vsub.f32 %v446, %v458
        %v461 = vmax.f32 %v459, 0.0
        %v462 = vmax.f32 %v460, 0.0
        %464 = vset.pattern.permute.xlu0 0
        %465 = vperm.xlu0 %464, %v424
        %v466 = vpop.permute.xlu0 %465
        %v469 = vperm.slane %v428, 0
        %v470 = vperm.slane %v428, 1
        %v473 = vmin.f32 %v466, %v469
        %v474 = vmin.f32 %v466, %v470
        %476 = vset.pattern.permute.xlu0 0
        %477 = vperm.xlu0 %476, %v422
        %v478 = vpop.permute.xlu0 %477
        %v481 = vperm.slane %v426, 0
        %v482 = vperm.slane %v426, 1
        %v485 = vmax.f32 %v478, %v481
        %v486 = vmax.f32 %v478, %v482
        %v487 = vsub.f32 %v473, %v485
        %v488 = vsub.f32 %v474, %v486
        %v489 = vmax.f32 %v487, 0.0
        %v490 = vmax.f32 %v488, 0.0
        %v491 = vmul.f32 %v461, %v489
        %v492 = vmul.f32 %v462, %v490
        %494 = vset.pattern.permute.xlu0 0
        %495 = vperm.xlu0 %494, %v431
        %v496 = vpop.permute.xlu0 %495
        %v499 = vperm.slane %v434, 0
        %v500 = vperm.slane %v434, 1
        %v503 = vadd.f32 %v496, %v499
        %v504 = vadd.f32 %v496, %v500
        %v505 = vsub.f32 %v503, %v491
        %v506 = vsub.f32 %v504, %v492
        %v507 = vadd.f32 %v505, 1e-09
        %v508 = vadd.f32 %v506, 1e-09
        %v509 = vrcp.pop %v507
        %v510 = vmul.f32 %v507, %v509
        %v511 = vsub.f32 1.0, %v510
        %v512 = vmul.f32 %v509, %v511
        %v513 = vadd.f32 %v509, %v512
        %vm514 = vweird.f32 %v507
        %vm515 = vweird.f32 %v509
        %vm516 = vmor %vm514, %vm515
        %v517 = vsel %vm516, %v509, %v513
        %v518 = vand.u32 2147483647, %v507
        %vm519 = vcmp.eq.f32.partialorder %v518, 8.507059e+37
        %v520 = vand.u32 %v507, 2147483648
        %v521 = vor.u32 1.1754944e-38, %v520
        %v522 = vsel %vm519, %v521, %v517
        %v523 = vmul.f32 %v491, %v522
        %v524 = vrcp.pop %v508
        %v525 = vmul.f32 %v508, %v524
        %v526 = vsub.f32 1.0, %v525
        %v527 = vmul.f32 %v524, %v526
        %v528 = vadd.f32 %v524, %v527
        %vm529 = vweird.f32 %v508
        %vm530 = vweird.f32 %v524
        %vm531 = vmor %vm529, %vm530
        %v532 = vsel %vm531, %v524, %v528
        %v533 = vand.u32 2147483647, %v508
        %vm534 = vcmp.eq.f32.partialorder %v533, 8.507059e+37
        %v535 = vand.u32 %v508, 2147483648
        %v536 = vor.u32 1.1754944e-38, %v535
        %v537 = vsel %vm534, %v536, %v532
        %v538 = vmul.f32 %v492, %v537
        %539 = vst [vmem:[%s395] sm:$0xff] %v523
        %540 = vst [vmem:[%s395 + $0x8] sm:$0xff] %v538
        %v541 = vadd.f32 %v421, %v423
        %v542 = vmul.f32 %v541, 0.5
        %v543 = vadd.f32 %v425, %v427
        %v544 = vmul.f32 %v543, 0.5
        %546 = vset.pattern.permute.xlu0 0
        %547 = vperm.xlu0 %546, %v542
        %v548 = vpop.permute.xlu0 %547
        %v551 = vperm.slane %v544, 0
        %v552 = vperm.slane %v544, 1
        %v555 = vsub.f32 %v548, %v551
        %v556 = vsub.f32 %v548, %v552
        %v557 = vadd.f32 %v422, %v424
        %v558 = vmul.f32 %v557, 0.5
        %v559 = vadd.f32 %v426, %v428
        %v560 = vmul.f32 %v559, 0.5
        %562 = vset.pattern.permute.xlu0 0
        %563 = vperm.xlu0 %562, %v558
        %v564 = vpop.permute.xlu0 %563
        %v567 = vperm.slane %v560, 0
        %v568 = vperm.slane %v560, 1
        %v571 = vsub.f32 %v564, %v567
        %v572 = vsub.f32 %v564, %v568
        %v573 = vmul.f32 %v555, %v555
        %v574 = vmul.f32 %v556, %v556
        %v575 = vmul.f32 %v571, %v571
        %v576 = vmul.f32 %v572, %v572
        %v577 = vadd.f32 %v573, %v575
        %v578 = vadd.f32 %v574, %v576
        %579 = vst [vmem:[%s402] sm:$0xff] %v577
        %580 = vst [vmem:[%s402 + $0x8] sm:$0xff] %v578
        %s581 = sand.u32 %s226, 1
        %s582 = scalar_lea.sflag [#allocation4], %s581
        %s583 = sand.u32 %s226, 1
        %s584 = smul.addr %s583, 16
        %s585 = scalar_lea.vmem [#allocation5], %s584
        %s586 = sand.u32 %s252, 1
        %s587 = scalar_lea.sflag [#allocation7], %s586
        %s588 = sand.u32 %s252, 1
        %s589 = smul.addr %s588, 16
        %s590 = scalar_lea.vmem [#allocation6], %s589
        // Predicated region
        $region57: #{tpu_custom_call.1} parent=51 // pred_check
          %p591 = pneg %p236
        $region58: #{tpu_custom_call.1} parent=51 // pred_check_branch
          %593 = sbr.rel (%p591) target = $region60
        $region59: #{tpu_custom_call.1} parent=51 // pred_region
          %s594 = smul.u32 2, %s30
          %596 = vsyncadd %s582, 0
          %s597 = smul.addr %s594, 8
          %s598 = scalar_lea.hbm %s8, %s597
          %s600 = sshll.u32 %s585, 4
          %s601 = int_to_ptr.vmem [resolvable:$true] %s600
          %s602 = sshll.u32 %s598, 4
          %s603 = int_to_ptr.hbm [resolvable:$true] %s602
          %605 = dma.vmem_to_hbm [thread:$0]  %s601, 256, %s603, %s582
        $region60: #{tpu_custom_call.1} parent=51 // pred_fallthru
          _
        // Predicated region
        $region61: #{tpu_custom_call.1} parent=51 // pred_check
          %p606 = pneg %p262
        $region62: #{tpu_custom_call.1} parent=51 // pred_check_branch
          %608 = sbr.rel (%p606) target = $region64
        $region63: #{tpu_custom_call.1} parent=51 // pred_region
          %s609 = smul.u32 2, %s30
          %611 = vsyncadd %s587, 0
          %s612 = smul.addr %s609, 8
          %s613 = scalar_lea.hbm %s9, %s612
          %s615 = sshll.u32 %s590, 4
          %s616 = int_to_ptr.vmem [resolvable:$true] %s615
          %s617 = sshll.u32 %s613, 4
          %s618 = int_to_ptr.hbm [resolvable:$true] %s617
          %620 = dma.vmem_to_hbm [thread:$0]  %s616, 256, %s618, %s587
        $region64: #{tpu_custom_call.1} parent=51 // pred_fallthru
          _
      $region52: #{tpu_custom_call.1} parent=5 // pred_fallthru
        _
      %p621 = scmp.le.s32.totalorder 2, %s25
      // Predicated region
      $region65: #{tpu_custom_call.1} parent=5 // pred_check
        %p622 = pneg %p621
      $region66: #{tpu_custom_call.1} parent=5 // pred_check_branch
        %624 = sbr.rel (%p622) target = $region68
      $region67: #{tpu_custom_call.1} parent=5 // pred_region
        %s625 = ssub.s32 %s25, 2
        // Predicated region
        $region69: #{tpu_custom_call.1} parent=67 // pred_check
          %p626 = pneg %p242
        $region70: #{tpu_custom_call.1} parent=67 // pred_check_branch
          %628 = sbr.rel (%p626) target = $region72
        $region71: #{tpu_custom_call.1} parent=67 // pred_region
          %s629 = sand.u32 %s227, 1
          %s630 = scalar_lea.sflag [#allocation4], %s629
          %s631 = sand.u32 %s227, 1
          %s632 = smul.addr %s631, 16
          %s633 = scalar_lea.vmem [#allocation5], %s632
          %635 = dma.done %s630, 256
        $region72: #{tpu_custom_call.1} parent=67 // pred_fallthru
          _
        // Predicated region
        $region73: #{tpu_custom_call.1} parent=67 // pred_check
          %p636 = pneg %p268
        $region74: #{tpu_custom_call.1} parent=67 // pred_check_branch
          %638 = sbr.rel (%p636) target = $region76
        $region75: #{tpu_custom_call.1} parent=67 // pred_region
          %s639 = sand.u32 %s253, 1
          %s640 = scalar_lea.sflag [#allocation7], %s639
          %s641 = sand.u32 %s253, 1
          %s642 = smul.addr %s641, 16
          %s643 = scalar_lea.vmem [#allocation6], %s642
          %645 = dma.done %s640, 256
        $region76: #{tpu_custom_call.1} parent=67 // pred_fallthru
          _
      $region68: #{tpu_custom_call.1} parent=5 // pred_fallthru
        _
    $region6: #{tpu_custom_call.1} parent=1 // loop_footer
      %s29 = sadd.s32 1, %s25
    $region7: #{tpu_custom_call.1} parent=1 // loop_footer_branch
      %24 = sbr.rel target = $region3
    $region8: #{tpu_custom_call.1} parent=1 // loop_exit
      _
    %646 = vsyncpa [#allocation3], 1
    %s647 = scalar_lea.sflag [#allocation3], 1
    %648 = vsyncpa %s647, 1
    %649 = vsyncpa [#allocation4], 1
    %s650 = scalar_lea.sflag [#allocation4], 1
    %651 = vsyncpa %s650, 1
    %652 = vsyncpa [#allocation7], 1
    %s653 = scalar_lea.sflag [#allocation7], 1
    %654 = vsyncpa %s653, 1

</llo_original>
